<compile_context>
chip_gen: v7x
topology: tpu7x:2x2x1
jax: 0.10.0
libtpu: 0.0.40
codegen_flags: <defaults>
</compile_context>

<pallas_src>
import math

import jax
import jax.numpy as jnp
import numpy as np
from jax.experimental import pallas as pl
from jax.experimental.pallas import tpu as pltpu


def _fixed_embedding_table(C, d_model):
    """Reproduce FixedEmbedding weight construction (numpy, deterministic)."""
    w = np.zeros((C, d_model), dtype=np.float32)
    position = np.arange(0, C, dtype=np.float32)[:, None]                # (C, 1)
    div_term = np.exp(np.arange(0, d_model, 2, dtype=np.float32)
                      * -(math.log(10000.0) / d_model))                  # (ceil(d/2),)
    sincos_in = position * div_term                                      # (C, ceil(d/2))
    w[:, 0::2] = np.sin(sincos_in)
    w[:, 1::2] = np.cos(sincos_in)[:, : w[:, 1::2].shape[1]]
    return w


def _make_temporal_kernel(field_offsets, r, f_used, c_pad, tile_m, d_model,
                          n_terms, hot_dtype):
    """field_offsets: static per-field row offsets into each c_pad block of the
    block-diagonal table, ordered as the fields appear along x's last axis.
    r: row-fold factor (output block last dim is r*d_model).
    n_terms: number of stacked table terms (2 for bf16 hi/lo split)."""

    def kernel(idx_ref, table_ref, out_ref):
        # idx_ref   : (tile_m, r*f_used) int32      -- r folded rows per output row
        # table_ref : (n_terms, r*c_pad, r*d_model) -- resident, constant index_map
        # out_ref   : (tile_m, r*d_model) f32       -- lane-dense output block
        idx = idx_ref[...]
        # Lane iota in the hot dtype (values 0..c_pad-1 are exact in bf16).
        lane = jax.lax.broadcasted_iota(jnp.int32, (tile_m, c_pad), 1).astype(hot_dtype)

        hots = []
        for k in range(r):                                     # static, small
            acc = None
            for f, off in enumerate(field_offsets):            # static, tiny
                col = k * f_used + f
                gid = (idx[:, col:col + 1] + off).astype(hot_dtype)   # (tile_m, 1)
                m = (lane == gid).astype(hot_dtype)                   # (tile_m, c_pad)
                acc = m if acc is None else acc + m            # init from first field
            hots.append(acc)
        # (tile_m, r*c_pad) multi-hot; segment k lines up with table block k.
        hot = hots[0] if r == 1 else jnp.concatenate(hots, axis=-1)

        res = jnp.dot(hot, table_ref[0], preferred_element_type=jnp.float32)
        for t in range(1, n_terms):                            # hi/lo split terms
            res = res + jnp.dot(hot, table_ref[t], preferred_element_type=jnp.float32)
        out_ref[...] = res

    return kernel


def temporal_embedding(x_idx, d_model, freq='h', *, mxu_mode='split',
                       max_rows_per_step=4096, vmem_row_budget=12 << 20):
    """x_idx: [B, L, F] integer array.
    Returns ([B, L, d_model] f32, concatenated f32 table, field offsets).

    mxu_mode:
      'split' (default): bf16 hi+lo table, two bf16 matmuls summed in f32
                          (~f32 parity, MXU stays on the bf16 fast path).
      'bf16'           : single bf16 table (~1e-3 rel error, fastest).
      'f32'            : f32 table + f32 multi-hot (bit-parity, slower on MXU/VPU;
                          use on v5e if bf16 VALU emulation is a concern)."""
    minute_size, hour_size, weekday_size, day_size, month_size = 4, 24, 7, 32, 13

    # Concatenated-table layout, ordered to match x's field order:
    #   field 0: month, 1: day, 2: weekday, 3: hour, [4: minute]
    sizes = [month_size, day_size, weekday_size, hour_size]
    if freq == 't':
        sizes.append(minute_size)
    f_used = len(sizes)
    offsets = tuple(int(o) for o in np.cumsum([0] + sizes[:-1]))

    tables = [_fixed_embedding_table(c, d_model) for c in sizes]
    table_np = np.concatenate(tables, axis=0)                           # (C_total, d)
    c_total = int(table_np.shape[0])
    c_pad = max(128, ((c_total + 127) // 128) * 128)                    # full lane width

    # Row-fold factor so the output block's last dim is lane-dense (>=128).
    if d_model < 128 and 128 % d_model == 0:
        r = 128 // d_model
    else:
        r = 1

    # Block-diagonal table: block k = concatenated table, so a single matmul of
    # the folded multi-hot produces all r folded rows' embeddings at once.
    table_bd = np.zeros((r * c_pad, r * d_model), dtype=np.float32)
    for k in range(r):
        table_bd[k * c_pad:k * c_pad + c_total,
                 k * d_model:(k + 1) * d_model] = table_np

    if mxu_mode == 'f32':
        table_terms = jnp.asarray(table_bd)[None]                       # (1, K, N) f32
        hot_dtype = jnp.float32
    else:
        table_f32 = jnp.asarray(table_bd)
        hi = table_f32.astype(jnp.bfloat16)
        if mxu_mode == 'split':
            lo = (table_f32 - hi.astype(jnp.float32)).astype(jnp.bfloat16)
            table_terms = jnp.stack([hi, lo])                           # (2, K, N) bf16
        else:  # 'bf16'
            table_terms = hi[None]                                      # (1, K, N) bf16
        hot_dtype = jnp.bfloat16
    n_terms = int(table_terms.shape[0])
    assert c_pad <= 256 or hot_dtype != jnp.bfloat16  # lane iota must be exact in bf16

    B, L, F = x_idx.shape
    assert F >= f_used, "x last dim must carry all required time fields"
    n = B * L

    # ---- tile sizing: big tiles, derived from n, >=2 grid steps when possible,
    # capped by a per-step VMEM row budget. ----
    quantum = 8 * r                                   # rows per sublane-aligned fold group
    hot_bytes = 2 if hot_dtype == jnp.bfloat16 else 4
    per_row = 2 * f_used * 4 + 2 * d_model * 4 + c_pad * hot_bytes      # bytes / orig row
    cap = max(quantum, ((vmem_row_budget // per_row) // quantum) * quantum)
    target = min(int(max_rows_per_step), cap)
    half = -(-n // 2)                                 # ceil(n/2): keep >=2 steps (v7x megacore)
    half = ((half + quantum - 1) // quantum) * quantum
    rows_per_step = max(quantum, min(target, half))
    tile_m = rows_per_step // r
    n_pad = ((n + rows_per_step - 1) // rows_per_step) * rows_per_step
    grid = n_pad // rows_per_step

    idx_flat = x_idx.reshape(n, F)[:, :f_used].astype(jnp.int32)        # (N, f_used)
    # Clamp each field to its valid range (prevents cross-subtable bleed).
    idx_flat = jnp.clip(idx_flat, 0, jnp.asarray([s - 1 for s in sizes], jnp.int32))
    if n_pad != n:
        idx_flat = jnp.pad(idx_flat, ((0, n_pad - n), (0, 0)))          # pad w/ idx 0
    idx_folded = idx_flat.reshape(n_pad // r, r * f_used)               # contiguous fold

    kernel = _make_temporal_kernel(offsets, r, f_used, c_pad, tile_m, d_model,
                                   n_terms, hot_dtype)

    out_folded = pl.pallas_call(
        kernel,
        out_shape=jax.ShapeDtypeStruct((n_pad // r, r * d_model), jnp.float32),
        grid_spec=pltpu.PrefetchScalarGridSpec(
            num_scalar_prefetch=0,
            grid=(grid,),
            in_specs=[
                pl.BlockSpec((tile_m, r * f_used), lambda i: (i, 0)),        # index tile
                pl.BlockSpec((n_terms, r * c_pad, r * d_model),
                             lambda i: (0, 0, 0)),                           # resident table
            ],
            out_specs=pl.BlockSpec((tile_m, r * d_model), lambda i: (i, 0)),
        ),
        compiler_params=pltpu.CompilerParams(
            dimension_semantics=("parallel",),
            vmem_limit_bytes=32 * 1024 * 1024),
    )(idx_folded, table_terms)

    out = out_folded.reshape(n_pad, d_model)[:n].reshape(B, L, d_model)
    return out, jnp.asarray(table_np), offsets


def _reference(x_idx, table, offsets, d_model):
    """Plain-JAX reference (sum of gathers), matching the PyTorch forward."""
    out = jnp.zeros(x_idx.shape[:2] + (d_model,), jnp.float32)
    for f, off in enumerate(offsets):
        out = out + jnp.take(table, x_idx[:, :, f].astype(jnp.int32) + off, axis=0)
    return out


if __name__ == "__main__":
    B, L, d_model = 2, 8, 32
    freq = 'h'   # default of the PyTorch module -> 4 fields, no minute embed

    key = jax.random.PRNGKey(0)
    k0, k1, k2, k3 = jax.random.split(key, 4)
    month = jax.random.randint(k0, (B, L, 1), 0, 13, dtype=jnp.int32)
    day = jax.random.randint(k1, (B, L, 1), 0, 32, dtype=jnp.int32)
    weekday = jax.random.randint(k2, (B, L, 1), 0, 7, dtype=jnp.int32)
    hour = jax.random.randint(k3, (B, L, 1), 0, 24, dtype=jnp.int32)
    x = jnp.concatenate([month, day, weekday, hour], axis=-1)            # [B, L, 4]

    out, table, offsets = temporal_embedding(x, d_model, freq=freq)
    out = jax.block_until_ready(out)

    ref = _reference(x, table, offsets, d_model)
    np.testing.assert_allclose(np.asarray(out), np.asarray(ref), rtol=5e-4, atol=5e-4)

    print("KERNEL_OK")
</pallas_src>

<mosaic_0001>
module attributes {stable_mosaic.version = 11 : i64} {
  func.func @kernel(%arg0: i32, %arg1: memref<8x16xi32, #tpu.memory_space<vmem>>, %arg2: memref<2x512x128xbf16, #tpu.memory_space<vmem>>, %arg3: memref<8x128xf32, #tpu.memory_space<vmem>>) attributes {dimension_semantics = [#tpu.dimension_semantics<parallel>], iteration_bounds = array<i64: 1>, scalar_prefetch = 0 : i64, scratch_operands = 0 : i64, tpu.core_type = #tpu.core_type<tc>, window_params = [{transform_indices = @transform_0, window_bounds = array<i64: 8, 16>}, {pipeline_mode = #tpu.pipeline_mode<synchronous>, transform_indices = @transform_1, window_bounds = array<i64: 2, 512, 128>}, {transform_indices = @transform_2, window_bounds = array<i64: 8, 128>}]} {
    %c0 = arith.constant 0 : index
    %c0_0 = arith.constant 0 : index
    %0 = vector.load %arg1[%c0, %c0_0] : memref<8x16xi32, #tpu.memory_space<vmem>>, vector<8x16xi32>
    %1 = tpu.iota {dimensions = array<i32: 1>} : vector<8x128xi32>
    %2 = arith.sitofp %1 : vector<8x128xi32> to vector<8x128xbf16>
    %3 = vector.extract_strided_slice %0 {offsets = [0, 0], sizes = [8, 1], strides = [1, 1]} : vector<8x16xi32> to vector<8x1xi32>
    %c0_i32 = arith.constant 0 : i32
    %4 = vector.broadcast %c0_i32 : i32 to vector<8x1xi32>
    %5 = arith.addi %3, %4 : vector<8x1xi32>
    %6 = arith.sitofp %5 : vector<8x1xi32> to vector<8x1xbf16>
    %7 = vector.broadcast %6 : vector<8x1xbf16> to vector<8x128xbf16>
    %8 = arith.cmpf oeq, %2, %7 : vector<8x128xbf16>
    %9 = arith.extui %8 : vector<8x128xi1> to vector<8x128xi32>
    %10 = arith.sitofp %9 : vector<8x128xi32> to vector<8x128xf32>
    %11 = arith.truncf %10 : vector<8x128xf32> to vector<8x128xbf16>
    %12 = vector.extract_strided_slice %0 {offsets = [0, 1], sizes = [8, 1], strides = [1, 1]} : vector<8x16xi32> to vector<8x1xi32>
    %c13_i32 = arith.constant 13 : i32
    %13 = vector.broadcast %c13_i32 : i32 to vector<8x1xi32>
    %14 = arith.addi %12, %13 : vector<8x1xi32>
    %15 = arith.sitofp %14 : vector<8x1xi32> to vector<8x1xbf16>
    %16 = vector.broadcast %15 : vector<8x1xbf16> to vector<8x128xbf16>
    %17 = arith.cmpf oeq, %2, %16 : vector<8x128xbf16>
    %18 = arith.extui %17 : vector<8x128xi1> to vector<8x128xi32>
    %19 = arith.sitofp %18 : vector<8x128xi32> to vector<8x128xf32>
    %20 = arith.truncf %19 : vector<8x128xf32> to vector<8x128xbf16>
    %21 = arith.addf %11, %20 : vector<8x128xbf16>
    %22 = vector.extract_strided_slice %0 {offsets = [0, 2], sizes = [8, 1], strides = [1, 1]} : vector<8x16xi32> to vector<8x1xi32>
    %c45_i32 = arith.constant 45 : i32
    %23 = vector.broadcast %c45_i32 : i32 to vector<8x1xi32>
    %24 = arith.addi %22, %23 : vector<8x1xi32>
    %25 = arith.sitofp %24 : vector<8x1xi32> to vector<8x1xbf16>
    %26 = vector.broadcast %25 : vector<8x1xbf16> to vector<8x128xbf16>
    %27 = arith.cmpf oeq, %2, %26 : vector<8x128xbf16>
    %28 = arith.extui %27 : vector<8x128xi1> to vector<8x128xi32>
    %29 = arith.sitofp %28 : vector<8x128xi32> to vector<8x128xf32>
    %30 = arith.truncf %29 : vector<8x128xf32> to vector<8x128xbf16>
    %31 = arith.addf %21, %30 : vector<8x128xbf16>
    %32 = vector.extract_strided_slice %0 {offsets = [0, 3], sizes = [8, 1], strides = [1, 1]} : vector<8x16xi32> to vector<8x1xi32>
    %c52_i32 = arith.constant 52 : i32
    %33 = vector.broadcast %c52_i32 : i32 to vector<8x1xi32>
    %34 = arith.addi %32, %33 : vector<8x1xi32>
    %35 = arith.sitofp %34 : vector<8x1xi32> to vector<8x1xbf16>
    %36 = vector.broadcast %35 : vector<8x1xbf16> to vector<8x128xbf16>
    %37 = arith.cmpf oeq, %2, %36 : vector<8x128xbf16>
    %38 = arith.extui %37 : vector<8x128xi1> to vector<8x128xi32>
    %39 = arith.sitofp %38 : vector<8x128xi32> to vector<8x128xf32>
    %40 = arith.truncf %39 : vector<8x128xf32> to vector<8x128xbf16>
    %41 = arith.addf %31, %40 : vector<8x128xbf16>
    %42 = vector.extract_strided_slice %0 {offsets = [0, 4], sizes = [8, 1], strides = [1, 1]} : vector<8x16xi32> to vector<8x1xi32>
    %c0_i32_1 = arith.constant 0 : i32
    %43 = vector.broadcast %c0_i32_1 : i32 to vector<8x1xi32>
    %44 = arith.addi %42, %43 : vector<8x1xi32>
    %45 = arith.sitofp %44 : vector<8x1xi32> to vector<8x1xbf16>
    %46 = vector.broadcast %45 : vector<8x1xbf16> to vector<8x128xbf16>
    %47 = arith.cmpf oeq, %2, %46 : vector<8x128xbf16>
    %48 = arith.extui %47 : vector<8x128xi1> to vector<8x128xi32>
    %49 = arith.sitofp %48 : vector<8x128xi32> to vector<8x128xf32>
    %50 = arith.truncf %49 : vector<8x128xf32> to vector<8x128xbf16>
    %51 = vector.extract_strided_slice %0 {offsets = [0, 5], sizes = [8, 1], strides = [1, 1]} : vector<8x16xi32> to vector<8x1xi32>
    %c13_i32_2 = arith.constant 13 : i32
    %52 = vector.broadcast %c13_i32_2 : i32 to vector<8x1xi32>
    %53 = arith.addi %51, %52 : vector<8x1xi32>
    %54 = arith.sitofp %53 : vector<8x1xi32> to vector<8x1xbf16>
    %55 = vector.broadcast %54 : vector<8x1xbf16> to vector<8x128xbf16>
    %56 = arith.cmpf oeq, %2, %55 : vector<8x128xbf16>
    %57 = arith.extui %56 : vector<8x128xi1> to vector<8x128xi32>
    %58 = arith.sitofp %57 : vector<8x128xi32> to vector<8x128xf32>
    %59 = arith.truncf %58 : vector<8x128xf32> to vector<8x128xbf16>
    %60 = arith.addf %50, %59 : vector<8x128xbf16>
    %61 = vector.extract_strided_slice %0 {offsets = [0, 6], sizes = [8, 1], strides = [1, 1]} : vector<8x16xi32> to vector<8x1xi32>
    %c45_i32_3 = arith.constant 45 : i32
    %62 = vector.broadcast %c45_i32_3 : i32 to vector<8x1xi32>
    %63 = arith.addi %61, %62 : vector<8x1xi32>
    %64 = arith.sitofp %63 : vector<8x1xi32> to vector<8x1xbf16>
    %65 = vector.broadcast %64 : vector<8x1xbf16> to vector<8x128xbf16>
    %66 = arith.cmpf oeq, %2, %65 : vector<8x128xbf16>
    %67 = arith.extui %66 : vector<8x128xi1> to vector<8x128xi32>
    %68 = arith.sitofp %67 : vector<8x128xi32> to vector<8x128xf32>
    %69 = arith.truncf %68 : vector<8x128xf32> to vector<8x128xbf16>
    %70 = arith.addf %60, %69 : vector<8x128xbf16>
    %71 = vector.extract_strided_slice %0 {offsets = [0, 7], sizes = [8, 1], strides = [1, 1]} : vector<8x16xi32> to vector<8x1xi32>
    %c52_i32_4 = arith.constant 52 : i32
    %72 = vector.broadcast %c52_i32_4 : i32 to vector<8x1xi32>
    %73 = arith.addi %71, %72 : vector<8x1xi32>
    %74 = arith.sitofp %73 : vector<8x1xi32> to vector<8x1xbf16>
    %75 = vector.broadcast %74 : vector<8x1xbf16> to vector<8x128xbf16>
    %76 = arith.cmpf oeq, %2, %75 : vector<8x128xbf16>
    %77 = arith.extui %76 : vector<8x128xi1> to vector<8x128xi32>
    %78 = arith.sitofp %77 : vector<8x128xi32> to vector<8x128xf32>
    %79 = arith.truncf %78 : vector<8x128xf32> to vector<8x128xbf16>
    %80 = arith.addf %70, %79 : vector<8x128xbf16>
    %81 = vector.extract_strided_slice %0 {offsets = [0, 8], sizes = [8, 1], strides = [1, 1]} : vector<8x16xi32> to vector<8x1xi32>
    %c0_i32_5 = arith.constant 0 : i32
    %82 = vector.broadcast %c0_i32_5 : i32 to vector<8x1xi32>
    %83 = arith.addi %81, %82 : vector<8x1xi32>
    %84 = arith.sitofp %83 : vector<8x1xi32> to vector<8x1xbf16>
    %85 = vector.broadcast %84 : vector<8x1xbf16> to vector<8x128xbf16>
    %86 = arith.cmpf oeq, %2, %85 : vector<8x128xbf16>
    %87 = arith.extui %86 : vector<8x128xi1> to vector<8x128xi32>
    %88 = arith.sitofp %87 : vector<8x128xi32> to vector<8x128xf32>
    %89 = arith.truncf %88 : vector<8x128xf32> to vector<8x128xbf16>
    %90 = vector.extract_strided_slice %0 {offsets = [0, 9], sizes = [8, 1], strides = [1, 1]} : vector<8x16xi32> to vector<8x1xi32>
    %c13_i32_6 = arith.constant 13 : i32
    %91 = vector.broadcast %c13_i32_6 : i32 to vector<8x1xi32>
    %92 = arith.addi %90, %91 : vector<8x1xi32>
    %93 = arith.sitofp %92 : vector<8x1xi32> to vector<8x1xbf16>
    %94 = vector.broadcast %93 : vector<8x1xbf16> to vector<8x128xbf16>
    %95 = arith.cmpf oeq, %2, %94 : vector<8x128xbf16>
    %96 = arith.extui %95 : vector<8x128xi1> to vector<8x128xi32>
    %97 = arith.sitofp %96 : vector<8x128xi32> to vector<8x128xf32>
    %98 = arith.truncf %97 : vector<8x128xf32> to vector<8x128xbf16>
    %99 = arith.addf %89, %98 : vector<8x128xbf16>
    %100 = vector.extract_strided_slice %0 {offsets = [0, 10], sizes = [8, 1], strides = [1, 1]} : vector<8x16xi32> to vector<8x1xi32>
    %c45_i32_7 = arith.constant 45 : i32
    %101 = vector.broadcast %c45_i32_7 : i32 to vector<8x1xi32>
    %102 = arith.addi %100, %101 : vector<8x1xi32>
    %103 = arith.sitofp %102 : vector<8x1xi32> to vector<8x1xbf16>
    %104 = vector.broadcast %103 : vector<8x1xbf16> to vector<8x128xbf16>
    %105 = arith.cmpf oeq, %2, %104 : vector<8x128xbf16>
    %106 = arith.extui %105 : vector<8x128xi1> to vector<8x128xi32>
    %107 = arith.sitofp %106 : vector<8x128xi32> to vector<8x128xf32>
    %108 = arith.truncf %107 : vector<8x128xf32> to vector<8x128xbf16>
    %109 = arith.addf %99, %108 : vector<8x128xbf16>
    %110 = vector.extract_strided_slice %0 {offsets = [0, 11], sizes = [8, 1], strides = [1, 1]} : vector<8x16xi32> to vector<8x1xi32>
    %c52_i32_8 = arith.constant 52 : i32
    %111 = vector.broadcast %c52_i32_8 : i32 to vector<8x1xi32>
    %112 = arith.addi %110, %111 : vector<8x1xi32>
    %113 = arith.sitofp %112 : vector<8x1xi32> to vector<8x1xbf16>
    %114 = vector.broadcast %113 : vector<8x1xbf16> to vector<8x128xbf16>
    %115 = arith.cmpf oeq, %2, %114 : vector<8x128xbf16>
    %116 = arith.extui %115 : vector<8x128xi1> to vector<8x128xi32>
    %117 = arith.sitofp %116 : vector<8x128xi32> to vector<8x128xf32>
    %118 = arith.truncf %117 : vector<8x128xf32> to vector<8x128xbf16>
    %119 = arith.addf %109, %118 : vector<8x128xbf16>
    %120 = vector.extract_strided_slice %0 {offsets = [0, 12], sizes = [8, 1], strides = [1, 1]} : vector<8x16xi32> to vector<8x1xi32>
    %c0_i32_9 = arith.constant 0 : i32
    %121 = vector.broadcast %c0_i32_9 : i32 to vector<8x1xi32>
    %122 = arith.addi %120, %121 : vector<8x1xi32>
    %123 = arith.sitofp %122 : vector<8x1xi32> to vector<8x1xbf16>
    %124 = vector.broadcast %123 : vector<8x1xbf16> to vector<8x128xbf16>
    %125 = arith.cmpf oeq, %2, %124 : vector<8x128xbf16>
    %126 = arith.extui %125 : vector<8x128xi1> to vector<8x128xi32>
    %127 = arith.sitofp %126 : vector<8x128xi32> to vector<8x128xf32>
    %128 = arith.truncf %127 : vector<8x128xf32> to vector<8x128xbf16>
    %129 = vector.extract_strided_slice %0 {offsets = [0, 13], sizes = [8, 1], strides = [1, 1]} : vector<8x16xi32> to vector<8x1xi32>
    %c13_i32_10 = arith.constant 13 : i32
    %130 = vector.broadcast %c13_i32_10 : i32 to vector<8x1xi32>
    %131 = arith.addi %129, %130 : vector<8x1xi32>
    %132 = arith.sitofp %131 : vector<8x1xi32> to vector<8x1xbf16>
    %133 = vector.broadcast %132 : vector<8x1xbf16> to vector<8x128xbf16>
    %134 = arith.cmpf oeq, %2, %133 : vector<8x128xbf16>
    %135 = arith.extui %134 : vector<8x128xi1> to vector<8x128xi32>
    %136 = arith.sitofp %135 : vector<8x128xi32> to vector<8x128xf32>
    %137 = arith.truncf %136 : vector<8x128xf32> to vector<8x128xbf16>
    %138 = arith.addf %128, %137 : vector<8x128xbf16>
    %139 = vector.extract_strided_slice %0 {offsets = [0, 14], sizes = [8, 1], strides = [1, 1]} : vector<8x16xi32> to vector<8x1xi32>
    %c45_i32_11 = arith.constant 45 : i32
    %140 = vector.broadcast %c45_i32_11 : i32 to vector<8x1xi32>
    %141 = arith.addi %139, %140 : vector<8x1xi32>
    %142 = arith.sitofp %141 : vector<8x1xi32> to vector<8x1xbf16>
    %143 = vector.broadcast %142 : vector<8x1xbf16> to vector<8x128xbf16>
    %144 = arith.cmpf oeq, %2, %143 : vector<8x128xbf16>
    %145 = arith.extui %144 : vector<8x128xi1> to vector<8x128xi32>
    %146 = arith.sitofp %145 : vector<8x128xi32> to vector<8x128xf32>
    %147 = arith.truncf %146 : vector<8x128xf32> to vector<8x128xbf16>
    %148 = arith.addf %138, %147 : vector<8x128xbf16>
    %149 = vector.extract_strided_slice %0 {offsets = [0, 15], sizes = [8, 1], strides = [1, 1]} : vector<8x16xi32> to vector<8x1xi32>
    %c52_i32_12 = arith.constant 52 : i32
    %150 = vector.broadcast %c52_i32_12 : i32 to vector<8x1xi32>
    %151 = arith.addi %149, %150 : vector<8x1xi32>
    %152 = arith.sitofp %151 : vector<8x1xi32> to vector<8x1xbf16>
    %153 = vector.broadcast %152 : vector<8x1xbf16> to vector<8x128xbf16>
    %154 = arith.cmpf oeq, %2, %153 : vector<8x128xbf16>
    %155 = arith.extui %154 : vector<8x128xi1> to vector<8x128xi32>
    %156 = arith.sitofp %155 : vector<8x128xi32> to vector<8x128xf32>
    %157 = arith.truncf %156 : vector<8x128xf32> to vector<8x128xbf16>
    %158 = arith.addf %148, %157 : vector<8x128xbf16>
    %159 = tpu.concatenate %41, %80, %119, %158 in 1 : vector<8x128xbf16>, vector<8x128xbf16>, vector<8x128xbf16>, vector<8x128xbf16> -> vector<8x512xbf16>
    %c0_13 = arith.constant 0 : index
    %c0_14 = arith.constant 0 : index
    %c0_15 = arith.constant 0 : index
    %160 = vector.load %arg2[%c0_13, %c0_14, %c0_15] : memref<2x512x128xbf16, #tpu.memory_space<vmem>>, vector<1x512x128xbf16>
    %161 = vector.shape_cast %160 : vector<1x512x128xbf16> to vector<512x128xbf16>
    %cst = arith.constant dense<0.000000e+00> : vector<8x128xf32>
    %162 = tpu.matmul %159, %161, %cst {dimension_numbers = #tpu.dot_dimension_numbers<[1], [0], [0], [1], [0, 0, 1, 1], [], []>} : vector<8x512xbf16>, vector<512x128xbf16>, vector<8x128xf32> -> vector<8x128xf32>
    %c1 = arith.constant 1 : index
    %c0_16 = arith.constant 0 : index
    %c0_17 = arith.constant 0 : index
    %163 = vector.load %arg2[%c1, %c0_16, %c0_17] : memref<2x512x128xbf16, #tpu.memory_space<vmem>>, vector<1x512x128xbf16>
    %164 = vector.shape_cast %163 : vector<1x512x128xbf16> to vector<512x128xbf16>
    %cst_18 = arith.constant dense<0.000000e+00> : vector<8x128xf32>
    %165 = tpu.matmul %159, %164, %cst_18 {dimension_numbers = #tpu.dot_dimension_numbers<[1], [0], [0], [1], [0, 0, 1, 1], [], []>} : vector<8x512xbf16>, vector<512x128xbf16>, vector<8x128xf32> -> vector<8x128xf32>
    %166 = arith.addf %162, %165 : vector<8x128xf32>
    %c0_19 = arith.constant 0 : index
    %c0_20 = arith.constant 0 : index
    %167 = vector.load %arg3[%c0_19, %c0_20] : memref<8x128xf32, #tpu.memory_space<vmem>>, vector<8x128xf32>
    tpu.vector_store %arg3[%c0_19, %c0_20], %166 {strides = array<i32>} : memref<8x128xf32, #tpu.memory_space<vmem>>, vector<8x128xf32>,
    return
  }
  func.func @transform_0(%arg0: i32) -> (i32, i32) {
    %c0_i32 = arith.constant 0 : i32
    %c0_i32_0 = arith.constant 0 : i32
    return %arg0, %c0_i32 : i32, i32
  }
  func.func @transform_1(%arg0: i32) -> (i32, i32, i32) {
    %c0_i32 = arith.constant 0 : i32
    %c0_i32_0 = arith.constant 0 : i32
    %c0_i32_1 = arith.constant 0 : i32
    %c0_i32_2 = arith.constant 0 : i32
    return %c0_i32, %c0_i32_0, %c0_i32_1 : i32, i32, i32
  }
  func.func @transform_2(%arg0: i32) -> (i32, i32) {
    %c0_i32 = arith.constant 0 : i32
    %c0_i32_0 = arith.constant 0 : i32
    return %arg0, %c0_i32 : i32, i32
  }
}

</mosaic_0001>

<llo_original>
// kernel: tpu_custom_call.1
$region0: #{tpu_custom_call.1}
  #allocation0 [shape = 'u32[]', space=smem, size = 0x4, offset = 0x4, fixed_abs, tag = 'smem constant byte address 0x4 - core index']
  #allocation1 [shape = 'u32[144,128]{1,0:T(1,128)}', space=vmem, size = 0x12000, scoped, tag = 'internal scratch']
  %s0 = inlined_call_operand.hbm [shape: s32[8,16], index: 0, kind: input, shape index: {}]
  %s1 = inlined_call_operand.hbm [shape: bf16[2,512,128], index: 1, kind: input, shape index: {}]
  %s2 = inlined_call_operand.hbm [shape: f32[8,128], index: 2, kind: output, shape index: {}]
  %s3 = sld [smem:[#allocation0]]
  $region26: #{tpu_custom_call.1} parent=0
    _
  %s5 = ssub.s32 1, %s3
  %s6 = scalar_select 0, %s5, %s3
  $region1: #{tpu_custom_call.1} parent=0
    #allocation2 [shape = 'u8[4096]{0}', space=vmem, size = 0x1000, scoped, tag = 'input window, operand 0, single buffered']
    #allocation3 [shape = 's32[1]{0}', space=sflag, size = 0x4, scoped, tag = 'scoped memory for tpu_custom_call.1']
    #allocation4 [shape = 's32[1]{0}', space=sflag, size = 0x4, scoped, tag = 'scoped memory for tpu_custom_call.1']
    #allocation5 [shape = 'u8[262144]{0}', space=vmem, size = 0x40000, scoped, tag = 'input window, operand 1, single buffered']
    #allocation6 [shape = 's32[1]{0}', space=sflag, size = 0x4, scoped, tag = 'scoped memory for tpu_custom_call.1']
    #allocation7 [shape = 'u8[4096]{0}', space=vmem, size = 0x1000, scoped, tag = 'output window, operand 0, single buffered']
    %7 = vsyncpa [#allocation3], 0
    %8 = vsyncpa [#allocation6], 0
    %9 = vsyncpa [#allocation4], 0
    // Predicated region
    $region2: #{tpu_custom_call.1} parent=1 // pred_check
      _
    $region3: #{tpu_custom_call.1} parent=1 // pred_check_branch
      %11 = sbr.rel (0) target = $region5
    $region4: #{tpu_custom_call.1} parent=1 // pred_region
      %s13 = ssub.s32 128, 128
      %14 = vsyncadd [#allocation3], %s13
      %s16 = sshll.u32 [#allocation2], 4
      %s17 = int_to_ptr.vmem [resolvable:$true] %s16
      %19 = dma.hbm_to_vmem [thread:$0]  %s0, 128, %s17, [#allocation3]
    $region5: #{tpu_custom_call.1} parent=1 // pred_fallthru
      _
    // Predicated region
    $region6: #{tpu_custom_call.1} parent=1 // pred_check
      _
    $region7: #{tpu_custom_call.1} parent=1 // pred_check_branch
      %21 = sbr.rel (0) target = $region9
    $region8: #{tpu_custom_call.1} parent=1 // pred_region
      %s23 = ssub.s32 8192, 8192
      %24 = vsyncadd [#allocation6], %s23
      %s25 = sshll.u32 [#allocation5], 4
      %s26 = int_to_ptr.vmem [resolvable:$true] %s25
      %31 = dma.hbm_to_vmem [thread:$0]  %s1, 8192, %s26, [#allocation6], 64, 64, 4
    $region9: #{tpu_custom_call.1} parent=1 // pred_fallthru
      _
    // Predicated region
    $region10: #{tpu_custom_call.1} parent=1 // pred_check
      _
    $region11: #{tpu_custom_call.1} parent=1 // pred_check_branch
      %33 = sbr.rel (0) target = $region13
    $region12: #{tpu_custom_call.1} parent=1 // pred_region
      %34 = dma.done [#allocation3], 128
    $region13: #{tpu_custom_call.1} parent=1 // pred_fallthru
      _
    // Predicated region
    $region14: #{tpu_custom_call.1} parent=1 // pred_check
      _
    $region15: #{tpu_custom_call.1} parent=1 // pred_check_branch
      %36 = sbr.rel (0) target = $region17
    $region16: #{tpu_custom_call.1} parent=1 // pred_region
      %37 = dma.done [#allocation6], 8192
    $region17: #{tpu_custom_call.1} parent=1 // pred_fallthru
      _
    %v41 = vld [vmem:[#allocation2] sm:$0xff]
    %v42 = vlaneseq
    %v43 = vand.u32 %v42, 127
    %v44 = vcvt.s32.f32 %v43
    %v45 = vpack.c.bf16 %v44, %v44
    %v46 = vcvt.s32.f32 %v41
    %v47 = vpack.c.bf16 %v46, %v46
    %49 = vset.pattern.permute.xlu0 0
    %50 = vperm.xlu0 %49, %v47
    %v51 = vpop.permute.xlu0 %50
    %vm53 = vcmp.eq.bf16.partialorder %v45, %v51
    %v54 = vsel %vm53, 65537, 0
    %v55 = vunpack.c.l.b16 %v54
    %vm56 = vcmp.ne.s32.totalorder %v55, 0
    %v57 = vsel %vm56, 1, 0
    %v58 = vcvt.s32.f32 %v57
    %v59 = vpack.c.bf16 %v58, %v58
    %v60 = vadd.s32 %v41, 13
    %v61 = vcvt.s32.f32 %v60
    %v62 = vpack.c.bf16 %v61, %v61
    %64 = vset.pattern.permute.xlu0 1
    %65 = vperm.xlu0 %64, %v62
    %v66 = vpop.permute.xlu0 %65
    %vm68 = vcmp.eq.bf16.partialorder %v45, %v66
    %v69 = vsel %vm68, 65537, 0
    %v70 = vunpack.c.l.b16 %v69
    %vm71 = vcmp.ne.s32.totalorder %v70, 0
    %v72 = vsel %vm71, 1, 0
    %v73 = vcvt.s32.f32 %v72
    %v74 = vpack.c.bf16 %v73, %v73
    %v75 = vadd.bf16 %v59, %v74
    %v76 = vadd.s32 %v41, 45
    %v77 = vcvt.s32.f32 %v76
    %v78 = vpack.c.bf16 %v77, %v77
    %80 = vset.pattern.permute.xlu0 2
    %81 = vperm.xlu0 %80, %v78
    %v82 = vpop.permute.xlu0 %81
    %vm84 = vcmp.eq.bf16.partialorder %v45, %v82
    %v85 = vsel %vm84, 65537, 0
    %v86 = vunpack.c.l.b16 %v85
    %vm87 = vcmp.ne.s32.totalorder %v86, 0
    %v88 = vsel %vm87, 1, 0
    %v89 = vcvt.s32.f32 %v88
    %v90 = vpack.c.bf16 %v89, %v89
    %v91 = vadd.bf16 %v75, %v90
    %v92 = vadd.s32 %v41, 52
    %v93 = vcvt.s32.f32 %v92
    %v94 = vpack.c.bf16 %v93, %v93
    %96 = vset.pattern.permute.xlu0 3
    %97 = vperm.xlu0 %96, %v94
    %v98 = vpop.permute.xlu0 %97
    %vm100 = vcmp.eq.bf16.partialorder %v45, %v98
    %v101 = vsel %vm100, 65537, 0
    %v102 = vunpack.c.l.b16 %v101
    %vm103 = vcmp.ne.s32.totalorder %v102, 0
    %v104 = vsel %vm103, 1, 0
    %v105 = vcvt.s32.f32 %v104
    %v106 = vpack.c.bf16 %v105, %v105
    %v107 = vadd.bf16 %v91, %v106
    %108 = vset.pattern.permute.xlu0 4
    %109 = vperm.xlu0 %108, %v47
    %v110 = vpop.permute.xlu0 %109
    %vm112 = vcmp.eq.bf16.partialorder %v45, %v110
    %v113 = vsel %vm112, 65537, 0
    %v114 = vunpack.c.l.b16 %v113
    %vm115 = vcmp.ne.s32.totalorder %v114, 0
    %v116 = vsel %vm115, 1, 0
    %v117 = vcvt.s32.f32 %v116
    %v118 = vpack.c.bf16 %v117, %v117
    %119 = vset.pattern.permute.xlu0 5
    %120 = vperm.xlu0 %119, %v62
    %v121 = vpop.permute.xlu0 %120
    %vm123 = vcmp.eq.bf16.partialorder %v45, %v121
    %v124 = vsel %vm123, 65537, 0
    %v125 = vunpack.c.l.b16 %v124
    %vm126 = vcmp.ne.s32.totalorder %v125, 0
    %v127 = vsel %vm126, 1, 0
    %v128 = vcvt.s32.f32 %v127
    %v129 = vpack.c.bf16 %v128, %v128
    %v130 = vadd.bf16 %v118, %v129
    %131 = vset.pattern.permute.xlu0 6
    %132 = vperm.xlu0 %131, %v78
    %v133 = vpop.permute.xlu0 %132
    %vm135 = vcmp.eq.bf16.partialorder %v45, %v133
    %v136 = vsel %vm135, 65537, 0
    %v137 = vunpack.c.l.b16 %v136
    %vm138 = vcmp.ne.s32.totalorder %v137, 0
    %v139 = vsel %vm138, 1, 0
    %v140 = vcvt.s32.f32 %v139
    %v141 = vpack.c.bf16 %v140, %v140
    %v142 = vadd.bf16 %v130, %v141
    %143 = vset.pattern.permute.xlu0 7
    %144 = vperm.xlu0 %143, %v94
    %v145 = vpop.permute.xlu0 %144
    %vm147 = vcmp.eq.bf16.partialorder %v45, %v145
    %v148 = vsel %vm147, 65537, 0
    %v149 = vunpack.c.l.b16 %v148
    %vm150 = vcmp.ne.s32.totalorder %v149, 0
    %v151 = vsel %vm150, 1, 0
    %v152 = vcvt.s32.f32 %v151
    %v153 = vpack.c.bf16 %v152, %v152
    %v154 = vadd.bf16 %v142, %v153
    %155 = vset.pattern.permute.xlu0 8
    %156 = vperm.xlu0 %155, %v47
    %v157 = vpop.permute.xlu0 %156
    %vm159 = vcmp.eq.bf16.partialorder %v45, %v157
    %v160 = vsel %vm159, 65537, 0
    %v161 = vunpack.c.l.b16 %v160
    %vm162 = vcmp.ne.s32.totalorder %v161, 0
    %v163 = vsel %vm162, 1, 0
    %v164 = vcvt.s32.f32 %v163
    %v165 = vpack.c.bf16 %v164, %v164
    %166 = vset.pattern.permute.xlu0 9
    %167 = vperm.xlu0 %166, %v62
    %v168 = vpop.permute.xlu0 %167
    %vm170 = vcmp.eq.bf16.partialorder %v45, %v168
    %v171 = vsel %vm170, 65537, 0
    %v172 = vunpack.c.l.b16 %v171
    %vm173 = vcmp.ne.s32.totalorder %v172, 0
    %v174 = vsel %vm173, 1, 0
    %v175 = vcvt.s32.f32 %v174
    %v176 = vpack.c.bf16 %v175, %v175
    %v177 = vadd.bf16 %v165, %v176
    %178 = vset.pattern.permute.xlu0 10
    %179 = vperm.xlu0 %178, %v78
    %v180 = vpop.permute.xlu0 %179
    %vm182 = vcmp.eq.bf16.partialorder %v45, %v180
    %v183 = vsel %vm182, 65537, 0
    %v184 = vunpack.c.l.b16 %v183
    %vm185 = vcmp.ne.s32.totalorder %v184, 0
    %v186 = vsel %vm185, 1, 0
    %v187 = vcvt.s32.f32 %v186
    %v188 = vpack.c.bf16 %v187, %v187
    %v189 = vadd.bf16 %v177, %v188
    %190 = vset.pattern.permute.xlu0 11
    %191 = vperm.xlu0 %190, %v94
    %v192 = vpop.permute.xlu0 %191
    %vm194 = vcmp.eq.bf16.partialorder %v45, %v192
    %v195 = vsel %vm194, 65537, 0
    %v196 = vunpack.c.l.b16 %v195
    %vm197 = vcmp.ne.s32.totalorder %v196, 0
    %v198 = vsel %vm197, 1, 0
    %v199 = vcvt.s32.f32 %v198
    %v200 = vpack.c.bf16 %v199, %v199
    %v201 = vadd.bf16 %v189, %v200
    %202 = vset.pattern.permute.xlu0 12
    %203 = vperm.xlu0 %202, %v47
    %v204 = vpop.permute.xlu0 %203
    %vm206 = vcmp.eq.bf16.partialorder %v45, %v204
    %v207 = vsel %vm206, 65537, 0
    %v208 = vunpack.c.l.b16 %v207
    %vm209 = vcmp.ne.s32.totalorder %v208, 0
    %v210 = vsel %vm209, 1, 0
    %v211 = vcvt.s32.f32 %v210
    %v212 = vpack.c.bf16 %v211, %v211
    %213 = vset.pattern.permute.xlu0 13
    %214 = vperm.xlu0 %213, %v62
    %v215 = vpop.permute.xlu0 %214
    %vm217 = vcmp.eq.bf16.partialorder %v45, %v215
    %v218 = vsel %vm217, 65537, 0
    %v219 = vunpack.c.l.b16 %v218
    %vm220 = vcmp.ne.s32.totalorder %v219, 0
    %v221 = vsel %vm220, 1, 0
    %v222 = vcvt.s32.f32 %v221
    %v223 = vpack.c.bf16 %v222, %v222
    %v224 = vadd.bf16 %v212, %v223
    %225 = vset.pattern.permute.xlu0 14
    %226 = vperm.xlu0 %225, %v78
    %v227 = vpop.permute.xlu0 %226
    %vm229 = vcmp.eq.bf16.partialorder %v45, %v227
    %v230 = vsel %vm229, 65537, 0
    %v231 = vunpack.c.l.b16 %v230
    %vm232 = vcmp.ne.s32.totalorder %v231, 0
    %v233 = vsel %vm232, 1, 0
    %v234 = vcvt.s32.f32 %v233
    %v235 = vpack.c.bf16 %v234, %v234
    %v236 = vadd.bf16 %v224, %v235
    %237 = vset.pattern.permute.xlu0 15
    %238 = vperm.xlu0 %237, %v94
    %v239 = vpop.permute.xlu0 %238
    %vm241 = vcmp.eq.bf16.partialorder %v45, %v239
    %v242 = vsel %vm241, 65537, 0
    %v243 = vunpack.c.l.b16 %v242
    %vm244 = vcmp.ne.s32.totalorder %v243, 0
    %v245 = vsel %vm244, 1, 0
    %v246 = vcvt.s32.f32 %v245
    %v247 = vpack.c.bf16 %v246, %v246
    %v248 = vadd.bf16 %v236, %v247
    %v249 = vld [vmem:[#allocation5] sm:$0xf]
    %v250 = vld [vmem:[#allocation5 + $0x4] sm:$0xf]
    %v251 = vld [vmem:[#allocation5 + $0x8] sm:$0xf]
    %v252 = vld [vmem:[#allocation5 + $0xc] sm:$0xf]
    %v253 = vld [vmem:[#allocation5 + $0x10] sm:$0xf]
    %v254 = vld [vmem:[#allocation5 + $0x14] sm:$0xf]
    %v255 = vld [vmem:[#allocation5 + $0x18] sm:$0xf]
    %v256 = vld [vmem:[#allocation5 + $0x1c] sm:$0xf]
    %v257 = vld [vmem:[#allocation5 + $0x20] sm:$0xf]
    %v258 = vld [vmem:[#allocation5 + $0x24] sm:$0xf]
    %v259 = vld [vmem:[#allocation5 + $0x28] sm:$0xf]
    %v260 = vld [vmem:[#allocation5 + $0x2c] sm:$0xf]
    %v261 = vld [vmem:[#allocation5 + $0x30] sm:$0xf]
    %v262 = vld [vmem:[#allocation5 + $0x34] sm:$0xf]
    %v263 = vld [vmem:[#allocation5 + $0x38] sm:$0xf]
    %v264 = vld [vmem:[#allocation5 + $0x3c] sm:$0xf]
    %v265 = vld [vmem:[#allocation5 + $0x40] sm:$0xf]
    %v266 = vld [vmem:[#allocation5 + $0x44] sm:$0xf]
    %v267 = vld [vmem:[#allocation5 + $0x48] sm:$0xf]
    %v268 = vld [vmem:[#allocation5 + $0x4c] sm:$0xf]
    %v269 = vld [vmem:[#allocation5 + $0x50] sm:$0xf]
    %v270 = vld [vmem:[#allocation5 + $0x54] sm:$0xf]
    %v271 = vld [vmem:[#allocation5 + $0x58] sm:$0xf]
    %v272 = vld [vmem:[#allocation5 + $0x5c] sm:$0xf]
    %v273 = vld [vmem:[#allocation5 + $0x60] sm:$0xf]
    %v274 = vld [vmem:[#allocation5 + $0x64] sm:$0xf]
    %v275 = vld [vmem:[#allocation5 + $0x68] sm:$0xf]
    %v276 = vld [vmem:[#allocation5 + $0x6c] sm:$0xf]
    %v277 = vld [vmem:[#allocation5 + $0x70] sm:$0xf]
    %v278 = vld [vmem:[#allocation5 + $0x74] sm:$0xf]
    %v279 = vld [vmem:[#allocation5 + $0x78] sm:$0xf]
    %v280 = vld [vmem:[#allocation5 + $0x7c] sm:$0xf]
    %v281 = vld [vmem:[#allocation5 + $0x80] sm:$0xf]
    %v282 = vld [vmem:[#allocation5 + $0x84] sm:$0xf]
    %v283 = vld [vmem:[#allocation5 + $0x88] sm:$0xf]
    %v284 = vld [vmem:[#allocation5 + $0x8c] sm:$0xf]
    %v285 = vld [vmem:[#allocation5 + $0x90] sm:$0xf]
    %v286 = vld [vmem:[#allocation5 + $0x94] sm:$0xf]
    %v287 = vld [vmem:[#allocation5 + $0x98] sm:$0xf]
    %v288 = vld [vmem:[#allocation5 + $0x9c] sm:$0xf]
    %v289 = vld [vmem:[#allocation5 + $0xa0] sm:$0xf]
    %v290 = vld [vmem:[#allocation5 + $0xa4] sm:$0xf]
    %v291 = vld [vmem:[#allocation5 + $0xa8] sm:$0xf]
    %v292 = vld [vmem:[#allocation5 + $0xac] sm:$0xf]
    %v293 = vld [vmem:[#allocation5 + $0xb0] sm:$0xf]
    %v294 = vld [vmem:[#allocation5 + $0xb4] sm:$0xf]
    %v295 = vld [vmem:[#allocation5 + $0xb8] sm:$0xf]
    %v296 = vld [vmem:[#allocation5 + $0xbc] sm:$0xf]
    %v297 = vld [vmem:[#allocation5 + $0xc0] sm:$0xf]
    %v298 = vld [vmem:[#allocation5 + $0xc4] sm:$0xf]
    %v299 = vld [vmem:[#allocation5 + $0xc8] sm:$0xf]
    %v300 = vld [vmem:[#allocation5 + $0xcc] sm:$0xf]
    %v301 = vld [vmem:[#allocation5 + $0xd0] sm:$0xf]
    %v302 = vld [vmem:[#allocation5 + $0xd4] sm:$0xf]
    %v303 = vld [vmem:[#allocation5 + $0xd8] sm:$0xf]
    %v304 = vld [vmem:[#allocation5 + $0xdc] sm:$0xf]
    %v305 = vld [vmem:[#allocation5 + $0xe0] sm:$0xf]
    %v306 = vld [vmem:[#allocation5 + $0xe4] sm:$0xf]
    %v307 = vld [vmem:[#allocation5 + $0xe8] sm:$0xf]
    %v308 = vld [vmem:[#allocation5 + $0xec] sm:$0xf]
    %v309 = vld [vmem:[#allocation5 + $0xf0] sm:$0xf]
    %v310 = vld [vmem:[#allocation5 + $0xf4] sm:$0xf]
    %v311 = vld [vmem:[#allocation5 + $0xf8] sm:$0xf]
    %v312 = vld [vmem:[#allocation5 + $0xfc] sm:$0xf]
    %s313 = scalar_lea.vmem [#allocation5], 256
    %v314 = vld [vmem:[%s313] sm:$0xf]
    %v315 = vld [vmem:[%s313 + $0x4] sm:$0xf]
    %v316 = vld [vmem:[%s313 + $0x8] sm:$0xf]
    %v317 = vld [vmem:[%s313 + $0xc] sm:$0xf]
    %v318 = vld [vmem:[%s313 + $0x10] sm:$0xf]
    %v319 = vld [vmem:[%s313 + $0x14] sm:$0xf]
    %v320 = vld [vmem:[%s313 + $0x18] sm:$0xf]
    %v321 = vld [vmem:[%s313 + $0x1c] sm:$0xf]
    %v322 = vld [vmem:[%s313 + $0x20] sm:$0xf]
    %v323 = vld [vmem:[%s313 + $0x24] sm:$0xf]
    %v324 = vld [vmem:[%s313 + $0x28] sm:$0xf]
    %v325 = vld [vmem:[%s313 + $0x2c] sm:$0xf]
    %v326 = vld [vmem:[%s313 + $0x30] sm:$0xf]
    %v327 = vld [vmem:[%s313 + $0x34] sm:$0xf]
    %v328 = vld [vmem:[%s313 + $0x38] sm:$0xf]
    %v329 = vld [vmem:[%s313 + $0x3c] sm:$0xf]
    %v330 = vld [vmem:[%s313 + $0x40] sm:$0xf]
    %v331 = vld [vmem:[%s313 + $0x44] sm:$0xf]
    %v332 = vld [vmem:[%s313 + $0x48] sm:$0xf]
    %v333 = vld [vmem:[%s313 + $0x4c] sm:$0xf]
    %v334 = vld [vmem:[%s313 + $0x50] sm:$0xf]
    %v335 = vld [vmem:[%s313 + $0x54] sm:$0xf]
    %v336 = vld [vmem:[%s313 + $0x58] sm:$0xf]
    %v337 = vld [vmem:[%s313 + $0x5c] sm:$0xf]
    %v338 = vld [vmem:[%s313 + $0x60] sm:$0xf]
    %v339 = vld [vmem:[%s313 + $0x64] sm:$0xf]
    %v340 = vld [vmem:[%s313 + $0x68] sm:$0xf]
    %v341 = vld [vmem:[%s313 + $0x6c] sm:$0xf]
    %v342 = vld [vmem:[%s313 + $0x70] sm:$0xf]
    %v343 = vld [vmem:[%s313 + $0x74] sm:$0xf]
    %v344 = vld [vmem:[%s313 + $0x78] sm:$0xf]
    %v345 = vld [vmem:[%s313 + $0x7c] sm:$0xf]
    %v346 = vld [vmem:[%s313 + $0x80] sm:$0xf]
    %v347 = vld [vmem:[%s313 + $0x84] sm:$0xf]
    %v348 = vld [vmem:[%s313 + $0x88] sm:$0xf]
    %v349 = vld [vmem:[%s313 + $0x8c] sm:$0xf]
    %v350 = vld [vmem:[%s313 + $0x90] sm:$0xf]
    %v351 = vld [vmem:[%s313 + $0x94] sm:$0xf]
    %v352 = vld [vmem:[%s313 + $0x98] sm:$0xf]
    %v353 = vld [vmem:[%s313 + $0x9c] sm:$0xf]
    %v354 = vld [vmem:[%s313 + $0xa0] sm:$0xf]
    %v355 = vld [vmem:[%s313 + $0xa4] sm:$0xf]
    %v356 = vld [vmem:[%s313 + $0xa8] sm:$0xf]
    %v357 = vld [vmem:[%s313 + $0xac] sm:$0xf]
    %v358 = vld [vmem:[%s313 + $0xb0] sm:$0xf]
    %v359 = vld [vmem:[%s313 + $0xb4] sm:$0xf]
    %v360 = vld [vmem:[%s313 + $0xb8] sm:$0xf]
    %v361 = vld [vmem:[%s313 + $0xbc] sm:$0xf]
    %v362 = vld [vmem:[%s313 + $0xc0] sm:$0xf]
    %v363 = vld [vmem:[%s313 + $0xc4] sm:$0xf]
    %v364 = vld [vmem:[%s313 + $0xc8] sm:$0xf]
    %v365 = vld [vmem:[%s313 + $0xcc] sm:$0xf]
    %v366 = vld [vmem:[%s313 + $0xd0] sm:$0xf]
    %v367 = vld [vmem:[%s313 + $0xd4] sm:$0xf]
    %v368 = vld [vmem:[%s313 + $0xd8] sm:$0xf]
    %v369 = vld [vmem:[%s313 + $0xdc] sm:$0xf]
    %v370 = vld [vmem:[%s313 + $0xe0] sm:$0xf]
    %v371 = vld [vmem:[%s313 + $0xe4] sm:$0xf]
    %v372 = vld [vmem:[%s313 + $0xe8] sm:$0xf]
    %v373 = vld [vmem:[%s313 + $0xec] sm:$0xf]
    %v374 = vld [vmem:[%s313 + $0xf0] sm:$0xf]
    %v375 = vld [vmem:[%s313 + $0xf4] sm:$0xf]
    %v376 = vld [vmem:[%s313 + $0xf8] sm:$0xf]
    %v377 = vld [vmem:[%s313 + $0xfc] sm:$0xf]
    %v442 = vunpack.c.l.b16 %v314
    %v443 = vunpack.c.l.b16 %v315
    %v444 = vunpack.c.l.b16 %v316
    %v445 = vunpack.c.l.b16 %v317
    %v446 = vunpack.c.l.b16 %v318
    %v447 = vunpack.c.l.b16 %v319
    %v448 = vunpack.c.l.b16 %v320
    %v449 = vunpack.c.l.b16 %v321
    %v450 = vunpack.c.l.b16 %v322
    %v451 = vunpack.c.l.b16 %v323
    %v452 = vunpack.c.l.b16 %v324
    %v453 = vunpack.c.l.b16 %v325
    %v454 = vunpack.c.l.b16 %v326
    %v455 = vunpack.c.l.b16 %v327
    %v456 = vunpack.c.l.b16 %v328
    %v457 = vunpack.c.l.b16 %v329
    %v458 = vunpack.c.l.b16 %v330
    %v459 = vunpack.c.l.b16 %v331
    %v460 = vunpack.c.l.b16 %v332
    %v461 = vunpack.c.l.b16 %v333
    %v462 = vunpack.c.l.b16 %v334
    %v463 = vunpack.c.l.b16 %v335
    %v464 = vunpack.c.l.b16 %v336
    %v465 = vunpack.c.l.b16 %v337
    %v466 = vunpack.c.l.b16 %v338
    %v467 = vunpack.c.l.b16 %v339
    %v468 = vunpack.c.l.b16 %v340
    %v469 = vunpack.c.l.b16 %v341
    %v470 = vunpack.c.l.b16 %v342
    %v471 = vunpack.c.l.b16 %v343
    %v472 = vunpack.c.l.b16 %v344
    %v473 = vunpack.c.l.b16 %v345
    %v474 = vunpack.c.l.b16 %v346
    %v475 = vunpack.c.l.b16 %v347
    %v476 = vunpack.c.l.b16 %v348
    %v477 = vunpack.c.l.b16 %v349
    %v478 = vunpack.c.l.b16 %v350
    %v479 = vunpack.c.l.b16 %v351
    %v480 = vunpack.c.l.b16 %v352
    %v481 = vunpack.c.l.b16 %v353
    %v482 = vunpack.c.l.b16 %v354
    %v483 = vunpack.c.l.b16 %v355
    %v484 = vunpack.c.l.b16 %v356
    %v485 = vunpack.c.l.b16 %v357
    %v486 = vunpack.c.l.b16 %v358
    %v487 = vunpack.c.l.b16 %v359
    %v488 = vunpack.c.l.b16 %v360
    %v489 = vunpack.c.l.b16 %v361
    %v490 = vunpack.c.l.b16 %v362
    %v491 = vunpack.c.l.b16 %v363
    %v492 = vunpack.c.l.b16 %v364
    %v493 = vunpack.c.l.b16 %v365
    %v494 = vunpack.c.l.b16 %v366
    %v495 = vunpack.c.l.b16 %v367
    %v496 = vunpack.c.l.b16 %v368
    %v497 = vunpack.c.l.b16 %v369
    %v498 = vunpack.c.l.b16 %v370
    %v499 = vunpack.c.l.b16 %v371
    %v500 = vunpack.c.l.b16 %v372
    %v501 = vunpack.c.l.b16 %v373
    %v502 = vunpack.c.l.b16 %v374
    %v503 = vunpack.c.l.b16 %v375
    %v504 = vunpack.c.l.b16 %v376
    %v505 = vunpack.c.l.b16 %v377
    %v506 = vpack.c.b16 %v443, %v442
    %v507 = vpack.c.b16 %v445, %v444
    %v508 = vpack.c.b16 %v447, %v446
    %v509 = vpack.c.b16 %v449, %v448
    %v510 = vpack.c.b16 %v451, %v450
    %v511 = vpack.c.b16 %v453, %v452
    %v512 = vpack.c.b16 %v455, %v454
    %v513 = vpack.c.b16 %v457, %v456
    %v514 = vpack.c.b16 %v459, %v458
    %v515 = vpack.c.b16 %v461, %v460
    %v516 = vpack.c.b16 %v463, %v462
    %v517 = vpack.c.b16 %v465, %v464
    %v518 = vpack.c.b16 %v467, %v466
    %v519 = vpack.c.b16 %v469, %v468
    %v520 = vpack.c.b16 %v471, %v470
    %v521 = vpack.c.b16 %v473, %v472
    %v522 = vpack.c.b16 %v475, %v474
    %v523 = vpack.c.b16 %v477, %v476
    %v524 = vpack.c.b16 %v479, %v478
    %v525 = vpack.c.b16 %v481, %v480
    %v526 = vpack.c.b16 %v483, %v482
    %v527 = vpack.c.b16 %v485, %v484
    %v528 = vpack.c.b16 %v487, %v486
    %v529 = vpack.c.b16 %v489, %v488
    %v530 = vpack.c.b16 %v491, %v490
    %v531 = vpack.c.b16 %v493, %v492
    %v532 = vpack.c.b16 %v495, %v494
    %v533 = vpack.c.b16 %v497, %v496
    %v534 = vpack.c.b16 %v499, %v498
    %v535 = vpack.c.b16 %v501, %v500
    %v536 = vpack.c.b16 %v503, %v502
    %v537 = vpack.c.b16 %v505, %v504
    %570 = vmatprep.subr.bf16.mxu0 0
    %571 = vmatpush1.bf16.msra.mxu0 %v506
    %572 = vmatprep.subr.bf16.mxu0 0
    %573 = vmatpush1.bf16.msra.mxu0 %v507
    %574 = vmatprep.subr.bf16.mxu0 0
    %575 = vmatpush1.bf16.msra.mxu0 %v508
    %576 = vmatprep.subr.bf16.mxu0 0
    %577 = vmatpush1.bf16.msra.mxu0 %v509
    %578 = vmatprep.subr.bf16.mxu0 0
    %579 = vmatpush1.bf16.msra.mxu0 %v510
    %580 = vmatprep.subr.bf16.mxu0 0
    %581 = vmatpush1.bf16.msra.mxu0 %v511
    %582 = vmatprep.subr.bf16.mxu0 0
    %583 = vmatpush1.bf16.msra.mxu0 %v512
    %584 = vmatprep.subr.bf16.mxu0 0
    %585 = vmatpush1.bf16.msra.mxu0 %v513
    %586 = vmatprep.subr.bf16.mxu0 0
    %587 = vmatpush1.bf16.msra.mxu0 %v514
    %588 = vmatprep.subr.bf16.mxu0 0
    %589 = vmatpush1.bf16.msra.mxu0 %v515
    %590 = vmatprep.subr.bf16.mxu0 0
    %591 = vmatpush1.bf16.msra.mxu0 %v516
    %592 = vmatprep.subr.bf16.mxu0 0
    %593 = vmatpush1.bf16.msra.mxu0 %v517
    %594 = vmatprep.subr.bf16.mxu0 0
    %595 = vmatpush1.bf16.msra.mxu0 %v518
    %596 = vmatprep.subr.bf16.mxu0 0
    %597 = vmatpush1.bf16.msra.mxu0 %v519
    %598 = vmatprep.subr.bf16.mxu0 0
    %599 = vmatpush1.bf16.msra.mxu0 %v520
    %600 = vmatprep.subr.bf16.mxu0 0
    %601 = vmatpush1.bf16.msra.mxu0 %v521
    %602 = vmatprep.mubr.bf16.mxu0 %v154
    %603 = vmatmul.mubr.bf16.gmra.mrb[0].mxu0 %v107
    %v604 = vpop.f32.mrb[0].mxu0
    %v605 = vadd.f32 0.0, %v604
    %v606 = vpop.f32.mrb[0].mxu0
    %v607 = vpop.f32.mrb[0].mxu0
    %v608 = vpop.f32.mrb[0].mxu0
    %609 = vdwg.mxu0
    %610 = vmatprep.subr.bf16.mxu0 0
    %611 = vmatpush1.bf16.msra.mxu0 %v522
    %612 = vmatprep.subr.bf16.mxu0 0
    %613 = vmatpush1.bf16.msra.mxu0 %v523
    %614 = vmatprep.subr.bf16.mxu0 0
    %615 = vmatpush1.bf16.msra.mxu0 %v524
    %616 = vmatprep.subr.bf16.mxu0 0
    %617 = vmatpush1.bf16.msra.mxu0 %v525
    %618 = vmatprep.subr.bf16.mxu0 0
    %619 = vmatpush1.bf16.msra.mxu0 %v526
    %620 = vmatprep.subr.bf16.mxu0 0
    %621 = vmatpush1.bf16.msra.mxu0 %v527
    %622 = vmatprep.subr.bf16.mxu0 0
    %623 = vmatpush1.bf16.msra.mxu0 %v528
    %624 = vmatprep.subr.bf16.mxu0 0
    %625 = vmatpush1.bf16.msra.mxu0 %v529
    %626 = vmatprep.subr.bf16.mxu0 0
    %627 = vmatpush1.bf16.msra.mxu0 %v530
    %628 = vmatprep.subr.bf16.mxu0 0
    %629 = vmatpush1.bf16.msra.mxu0 %v531
    %630 = vmatprep.subr.bf16.mxu0 0
    %631 = vmatpush1.bf16.msra.mxu0 %v532
    %632 = vmatprep.subr.bf16.mxu0 0
    %633 = vmatpush1.bf16.msra.mxu0 %v533
    %634 = vmatprep.subr.bf16.mxu0 0
    %635 = vmatpush1.bf16.msra.mxu0 %v534
    %636 = vmatprep.subr.bf16.mxu0 0
    %637 = vmatpush1.bf16.msra.mxu0 %v535
    %638 = vmatprep.subr.bf16.mxu0 0
    %639 = vmatpush1.bf16.msra.mxu0 %v536
    %640 = vmatprep.subr.bf16.mxu0 0
    %641 = vmatpush1.bf16.msra.mxu0 %v537
    %642 = vmatprep.mubr.bf16.mxu0 %v248
    %643 = vmatmul.mubr.bf16.gmra.mrb[0].mxu0 %v201
    %v644 = vpop.f32.mrb[0].mxu0
    %v645 = vadd.f32 %v605, %v644
    %v646 = vpop.f32.mrb[0].mxu0
    %v647 = vpop.f32.mrb[0].mxu0
    %v648 = vpop.f32.mrb[0].mxu0
    %649 = vdwg.mxu0
    %v714 = vunpack.c.l.b16 %v249
    %v715 = vunpack.c.l.b16 %v250
    %v716 = vunpack.c.l.b16 %v251
    %v717 = vunpack.c.l.b16 %v252
    %v718 = vunpack.c.l.b16 %v253
    %v719 = vunpack.c.l.b16 %v254
    %v720 = vunpack.c.l.b16 %v255
    %v721 = vunpack.c.l.b16 %v256
    %v722 = vunpack.c.l.b16 %v257
    %v723 = vunpack.c.l.b16 %v258
    %v724 = vunpack.c.l.b16 %v259
    %v725 = vunpack.c.l.b16 %v260
    %v726 = vunpack.c.l.b16 %v261
    %v727 = vunpack.c.l.b16 %v262
    %v728 = vunpack.c.l.b16 %v263
    %v729 = vunpack.c.l.b16 %v264
    %v730 = vunpack.c.l.b16 %v265
    %v731 = vunpack.c.l.b16 %v266
    %v732 = vunpack.c.l.b16 %v267
    %v733 = vunpack.c.l.b16 %v268
    %v734 = vunpack.c.l.b16 %v269
    %v735 = vunpack.c.l.b16 %v270
    %v736 = vunpack.c.l.b16 %v271
    %v737 = vunpack.c.l.b16 %v272
    %v738 = vunpack.c.l.b16 %v273
    %v739 = vunpack.c.l.b16 %v274
    %v740 = vunpack.c.l.b16 %v275
    %v741 = vunpack.c.l.b16 %v276
    %v742 = vunpack.c.l.b16 %v277
    %v743 = vunpack.c.l.b16 %v278
    %v744 = vunpack.c.l.b16 %v279
    %v745 = vunpack.c.l.b16 %v280
    %v746 = vunpack.c.l.b16 %v281
    %v747 = vunpack.c.l.b16 %v282
    %v748 = vunpack.c.l.b16 %v283
    %v749 = vunpack.c.l.b16 %v284
    %v750 = vunpack.c.l.b16 %v285
    %v751 = vunpack.c.l.b16 %v286
    %v752 = vunpack.c.l.b16 %v287
    %v753 = vunpack.c.l.b16 %v288
    %v754 = vunpack.c.l.b16 %v289
    %v755 = vunpack.c.l.b16 %v290
    %v756 = vunpack.c.l.b16 %v291
    %v757 = vunpack.c.l.b16 %v292
    %v758 = vunpack.c.l.b16 %v293
    %v759 = vunpack.c.l.b16 %v294
    %v760 = vunpack.c.l.b16 %v295
    %v761 = vunpack.c.l.b16 %v296
    %v762 = vunpack.c.l.b16 %v297
    %v763 = vunpack.c.l.b16 %v298
    %v764 = vunpack.c.l.b16 %v299
    %v765 = vunpack.c.l.b16 %v300
    %v766 = vunpack.c.l.b16 %v301
    %v767 = vunpack.c.l.b16 %v302
    %v768 = vunpack.c.l.b16 %v303
    %v769 = vunpack.c.l.b16 %v304
    %v770 = vunpack.c.l.b16 %v305
    %v771 = vunpack.c.l.b16 %v306
    %v772 = vunpack.c.l.b16 %v307
    %v773 = vunpack.c.l.b16 %v308
    %v774 = vunpack.c.l.b16 %v309
    %v775 = vunpack.c.l.b16 %v310
    %v776 = vunpack.c.l.b16 %v311
    %v777 = vunpack.c.l.b16 %v312
    %v778 = vpack.c.b16 %v715, %v714
    %v779 = vpack.c.b16 %v717, %v716
    %v780 = vpack.c.b16 %v719, %v718
    %v781 = vpack.c.b16 %v721, %v720
    %v782 = vpack.c.b16 %v723, %v722
    %v783 = vpack.c.b16 %v725, %v724
    %v784 = vpack.c.b16 %v727, %v726
    %v785 = vpack.c.b16 %v729, %v728
    %v786 = vpack.c.b16 %v731, %v730
    %v787 = vpack.c.b16 %v733, %v732
    %v788 = vpack.c.b16 %v735, %v734
    %v789 = vpack.c.b16 %v737, %v736
    %v790 = vpack.c.b16 %v739, %v738
    %v791 = vpack.c.b16 %v741, %v740
    %v792 = vpack.c.b16 %v743, %v742
    %v793 = vpack.c.b16 %v745, %v744
    %v794 = vpack.c.b16 %v747, %v746
    %v795 = vpack.c.b16 %v749, %v748
    %v796 = vpack.c.b16 %v751, %v750
    %v797 = vpack.c.b16 %v753, %v752
    %v798 = vpack.c.b16 %v755, %v754
    %v799 = vpack.c.b16 %v757, %v756
    %v800 = vpack.c.b16 %v759, %v758
    %v801 = vpack.c.b16 %v761, %v760
    %v802 = vpack.c.b16 %v763, %v762
    %v803 = vpack.c.b16 %v765, %v764
    %v804 = vpack.c.b16 %v767, %v766
    %v805 = vpack.c.b16 %v769, %v768
    %v806 = vpack.c.b16 %v771, %v770
    %v807 = vpack.c.b16 %v773, %v772
    %v808 = vpack.c.b16 %v775, %v774
    %v809 = vpack.c.b16 %v777, %v776
    %842 = vmatprep.subr.bf16.mxu0 0
    %843 = vmatpush1.bf16.msra.mxu0 %v778
    %844 = vmatprep.subr.bf16.mxu0 0
    %845 = vmatpush1.bf16.msra.mxu0 %v779
    %846 = vmatprep.subr.bf16.mxu0 0
    %847 = vmatpush1.bf16.msra.mxu0 %v780
    %848 = vmatprep.subr.bf16.mxu0 0
    %849 = vmatpush1.bf16.msra.mxu0 %v781
    %850 = vmatprep.subr.bf16.mxu0 0
    %851 = vmatpush1.bf16.msra.mxu0 %v782
    %852 = vmatprep.subr.bf16.mxu0 0
    %853 = vmatpush1.bf16.msra.mxu0 %v783
    %854 = vmatprep.subr.bf16.mxu0 0
    %855 = vmatpush1.bf16.msra.mxu0 %v784
    %856 = vmatprep.subr.bf16.mxu0 0
    %857 = vmatpush1.bf16.msra.mxu0 %v785
    %858 = vmatprep.subr.bf16.mxu0 0
    %859 = vmatpush1.bf16.msra.mxu0 %v786
    %860 = vmatprep.subr.bf16.mxu0 0
    %861 = vmatpush1.bf16.msra.mxu0 %v787
    %862 = vmatprep.subr.bf16.mxu0 0
    %863 = vmatpush1.bf16.msra.mxu0 %v788
    %864 = vmatprep.subr.bf16.mxu0 0
    %865 = vmatpush1.bf16.msra.mxu0 %v789
    %866 = vmatprep.subr.bf16.mxu0 0
    %867 = vmatpush1.bf16.msra.mxu0 %v790
    %868 = vmatprep.subr.bf16.mxu0 0
    %869 = vmatpush1.bf16.msra.mxu0 %v791
    %870 = vmatprep.subr.bf16.mxu0 0
    %871 = vmatpush1.bf16.msra.mxu0 %v792
    %872 = vmatprep.subr.bf16.mxu0 0
    %873 = vmatpush1.bf16.msra.mxu0 %v793
    %874 = vmatprep.mubr.bf16.mxu0 %v154
    %875 = vmatmul.mubr.bf16.gmra.mrb[0].mxu0 %v107
    %v876 = vpop.f32.mrb[0].mxu0
    %v877 = vadd.f32 %v645, %v876
    %v878 = vpop.f32.mrb[0].mxu0
    %v879 = vpop.f32.mrb[0].mxu0
    %v880 = vpop.f32.mrb[0].mxu0
    %881 = vdwg.mxu0
    %882 = vmatprep.subr.bf16.mxu0 0
    %883 = vmatpush1.bf16.msra.mxu0 %v794
    %884 = vmatprep.subr.bf16.mxu0 0
    %885 = vmatpush1.bf16.msra.mxu0 %v795
    %886 = vmatprep.subr.bf16.mxu0 0
    %887 = vmatpush1.bf16.msra.mxu0 %v796
    %888 = vmatprep.subr.bf16.mxu0 0
    %889 = vmatpush1.bf16.msra.mxu0 %v797
    %890 = vmatprep.subr.bf16.mxu0 0
    %891 = vmatpush1.bf16.msra.mxu0 %v798
    %892 = vmatprep.subr.bf16.mxu0 0
    %893 = vmatpush1.bf16.msra.mxu0 %v799
    %894 = vmatprep.subr.bf16.mxu0 0
    %895 = vmatpush1.bf16.msra.mxu0 %v800
    %896 = vmatprep.subr.bf16.mxu0 0
    %897 = vmatpush1.bf16.msra.mxu0 %v801
    %898 = vmatprep.subr.bf16.mxu0 0
    %899 = vmatpush1.bf16.msra.mxu0 %v802
    %900 = vmatprep.subr.bf16.mxu0 0
    %901 = vmatpush1.bf16.msra.mxu0 %v803
    %902 = vmatprep.subr.bf16.mxu0 0
    %903 = vmatpush1.bf16.msra.mxu0 %v804
    %904 = vmatprep.subr.bf16.mxu0 0
    %905 = vmatpush1.bf16.msra.mxu0 %v805
    %906 = vmatprep.subr.bf16.mxu0 0
    %907 = vmatpush1.bf16.msra.mxu0 %v806
    %908 = vmatprep.subr.bf16.mxu0 0
    %909 = vmatpush1.bf16.msra.mxu0 %v807
    %910 = vmatprep.subr.bf16.mxu0 0
    %911 = vmatpush1.bf16.msra.mxu0 %v808
    %912 = vmatprep.subr.bf16.mxu0 0
    %913 = vmatpush1.bf16.msra.mxu0 %v809
    %914 = vmatprep.mubr.bf16.mxu0 %v248
    %915 = vmatmul.mubr.bf16.gmra.mrb[0].mxu0 %v201
    %v916 = vpop.f32.mrb[0].mxu0
    %v917 = vadd.f32 %v877, %v916
    %v918 = vpop.f32.mrb[0].mxu0
    %v919 = vpop.f32.mrb[0].mxu0
    %v920 = vpop.f32.mrb[0].mxu0
    %921 = vdwg.mxu0
    %922 = vst [vmem:[#allocation7] sm:$0xff] %v917
    // Predicated region
    $region18: #{tpu_custom_call.1} parent=1 // pred_check
      _
    $region19: #{tpu_custom_call.1} parent=1 // pred_check_branch
      %924 = sbr.rel (0) target = $region21
    $region20: #{tpu_custom_call.1} parent=1 // pred_region
      %s926 = ssub.s32 128, 128
      %927 = vsyncadd [#allocation4], %s926
      %s929 = sshll.u32 [#allocation7], 4
      %s930 = int_to_ptr.vmem [resolvable:$true] %s929
      %932 = dma.vmem_to_hbm [thread:$0]  %s930, 128, %s2, [#allocation4]
    $region21: #{tpu_custom_call.1} parent=1 // pred_fallthru
      _
    // Predicated region
    $region22: #{tpu_custom_call.1} parent=1 // pred_check
      _
    $region23: #{tpu_custom_call.1} parent=1 // pred_check_branch
      %934 = sbr.rel (0) target = $region25
    $region24: #{tpu_custom_call.1} parent=1 // pred_region
      %935 = dma.done [#allocation4], 128
    $region25: #{tpu_custom_call.1} parent=1 // pred_fallthru
      _
    %936 = vsyncpa [#allocation3], 1
    %937 = vsyncpa [#allocation6], 1
    %938 = vsyncpa [#allocation4], 1

</llo_original>
